<compile_context>
chip_gen: v7x
topology: tpu7x:2x2x1
jax: 0.10.0
libtpu: 0.0.40
codegen_flags: <defaults>
</compile_context>

<pallas_src>
import jax
import jax.numpy as jnp
from jax.experimental import pallas as pl
from jax.experimental.pallas import tpu as pltpu


def _round_up(x: int, m: int) -> int:
    return ((x + m - 1) // m) * m


def _choose_tile_b(B: int, tile_b: int) -> int:
    """Pick a batch tile: multiple of 8 (or == B), balanced, >=2 grid steps when B>=64."""
    tile_b = max(8, (tile_b // 8) * 8)
    if B < 64:
        # Single block spanning the whole (small) batch; block == full array dim
        # is always a legal BlockSpec regardless of divisibility.
        return B
    n_tiles = max(-(-B // tile_b), 2)      # >= 2 steps so both v7x TCs get work
    tile = -(-B // n_tiles)                # balanced tiles -> bounded tail waste
    return _round_up(tile, 8)              # multiple of 8; always < B since n_tiles>=2


def _policy_kernel(x_ref, w1_ref, b1_ref, w2_ref, b2_ref, o_ref):
    # fc1: bf16 MXU matmul (f32 accumulate) + bias + ReLU in f32.
    x = x_ref[...].astype(jnp.bfloat16)
    h = jnp.dot(x, w1_ref[...], preferred_element_type=jnp.float32)
    h = jnp.maximum(h + b1_ref[...], 0.0)                  # (tile_b, 256)

    # fc2: bf16 MXU matmul (f32 accumulate) + bias.
    logits = jnp.dot(h.astype(jnp.bfloat16), w2_ref[...],
                     preferred_element_type=jnp.float32)
    logits = logits + b2_ref[...]                          # (tile_b, num_out)

    # Numerically stable softmax over the last dim (exact divide: kernel is
    # HBM-bound, so the extra VPU work is free and rows sum to 1 at ~f32 eps).
    m = jnp.max(logits, axis=-1, keepdims=True)
    e = jnp.exp(logits - m)
    denom = jnp.sum(e, axis=-1, keepdims=True)
    o_ref[...] = (e / denom).astype(o_ref.dtype)


def prepare_policy_params(w1, b1, w2, b2):
    """One-time parameter prep (bf16 cast + bias reshape); reuse across calls."""
    hidden = w1.shape[1]
    num_out = w2.shape[1]
    return (w1.astype(jnp.bfloat16),
            b1.reshape(1, hidden).astype(jnp.float32),
            w2.astype(jnp.bfloat16),
            b2.reshape(1, num_out).astype(jnp.float32))


def policy_net_single_layer(x, w1_bf16, b1, w2_bf16, b2, *, tile_b: int = 1024):
    """x: (B, num_inputs) f32. Returns softmax probs (B, num_outputs) f32.

    w1_bf16: (num_inputs, 256) bf16, b1: (1, 256) f32
    w2_bf16: (256, num_outputs) bf16, b2: (1, num_outputs) f32
    (use prepare_policy_params to build these once from f32 parameters)
    """
    B, num_in = x.shape
    hidden = w1_bf16.shape[1]
    num_out = w2_bf16.shape[1]

    tile = _choose_tile_b(B, tile_b)
    grid = (pl.cdiv(B, tile),)

    return pl.pallas_call(
        _policy_kernel,
        out_shape=jax.ShapeDtypeStruct((B, num_out), jnp.float32),
        grid=grid,
        in_specs=[
            # batch-tiled activations (unpadded; last dim == full array dim)
            pl.BlockSpec((tile, num_in), lambda i: (i, 0)),
            # weights / biases resident in VMEM across all batch tiles
            pl.BlockSpec((num_in, hidden), lambda i: (0, 0)),
            pl.BlockSpec((1, hidden), lambda i: (0, 0)),
            pl.BlockSpec((hidden, num_out), lambda i: (0, 0)),
            pl.BlockSpec((1, num_out), lambda i: (0, 0)),
        ],
        # narrow output block: exact (B, num_out), no padded slab, no post-slice
        out_specs=pl.BlockSpec((tile, num_out), lambda i: (i, 0)),
        compiler_params=pltpu.CompilerParams(
            dimension_semantics=("parallel",)),
    )(x, w1_bf16, b1, w2_bf16, b2)


def _reference(x, w1, b1, w2, b2):
    h = jnp.maximum(x @ w1 + b1.reshape(1, -1), 0.0)
    return jax.nn.softmax(h @ w2 + b2.reshape(1, -1), axis=-1)


if __name__ == "__main__":
    # Small shapes consistent with the module's forward.
    batch = 2
    num_inputs = 32
    hidden = 256           # fixed by the module
    num_outputs = 8

    key = jax.random.PRNGKey(0)
    k_x, k_w1, k_b1, k_w2, k_b2, k_x2 = jax.random.split(key, 6)

    x = jax.random.normal(k_x, (batch, num_inputs), dtype=jnp.float32)
    # Deterministic synthetic parameters (scaled like PyTorch's uniform init range).
    w1 = jax.random.uniform(k_w1, (num_inputs, hidden), dtype=jnp.float32,
                            minval=-1.0, maxval=1.0) / jnp.sqrt(num_inputs)
    b1 = jax.random.uniform(k_b1, (1, hidden), dtype=jnp.float32,
                            minval=-1.0, maxval=1.0) / jnp.sqrt(num_inputs)
    w2 = jax.random.uniform(k_w2, (hidden, num_outputs), dtype=jnp.float32,
                            minval=-1.0, maxval=1.0) / jnp.sqrt(hidden)
    b2 = jax.random.uniform(k_b2, (1, num_outputs), dtype=jnp.float32,
                            minval=-1.0, maxval=1.0) / jnp.sqrt(hidden)

    # One-time parameter prep (hoisted out of the per-call path).
    w1_p, b1_p, w2_p, b2_p = prepare_policy_params(w1, b1, w2, b2)

    # --- tiny-batch check (single block spanning the whole batch) ---
    probs = jax.block_until_ready(
        policy_net_single_layer(x, w1_p, b1_p, w2_p, b2_p))
    ref = _reference(x, w1, b1, w2, b2)
    assert probs.shape == (batch, num_outputs)
    # bf16 MXU inputs -> slightly looser tolerance than pure f32.
    assert jnp.allclose(probs, ref, atol=2e-2, rtol=2e-2)
    # exact divide -> rows sum to 1 to ~f32 epsilon.
    assert jnp.allclose(jnp.sum(probs, axis=-1), 1.0, atol=1e-3)

    # --- batched check exercising the batch grid (multiple tiles, weights resident) ---
    big_b = 384
    x_big = jax.random.normal(k_x2, (big_b, num_inputs), dtype=jnp.float32)
    probs_big = jax.block_until_ready(
        policy_net_single_layer(x_big, w1_p, b1_p, w2_p, b2_p, tile_b=128))
    ref_big = _reference(x_big, w1, b1, w2, b2)
    assert probs_big.shape == (big_b, num_outputs)
    assert jnp.allclose(probs_big, ref_big, atol=2e-2, rtol=2e-2)
    assert jnp.allclose(jnp.sum(probs_big, axis=-1), 1.0, atol=1e-3)

    print("KERNEL_OK")
</pallas_src>

<mosaic_0001>
module attributes {stable_mosaic.version = 11 : i64} {
  func.func @_policy_kernel(%arg0: i32, %arg1: memref<2x32xf32, #tpu.memory_space<vmem>>, %arg2: memref<32x256xbf16, #tpu.memory_space<vmem>>, %arg3: memref<1x256xf32, #tpu.memory_space<vmem>>, %arg4: memref<256x8xbf16, #tpu.memory_space<vmem>>, %arg5: memref<1x8xf32, #tpu.memory_space<vmem>>, %arg6: memref<2x8xf32, #tpu.memory_space<vmem>>) attributes {dimension_semantics = [#tpu.dimension_semantics<parallel>], iteration_bounds = array<i64: 1>, scalar_prefetch = 0 : i64, scratch_operands = 0 : i64, tpu.core_type = #tpu.core_type<tc>, window_params = [{transform_indices = @transform_0, window_bounds = array<i64: 2, 32>}, {pipeline_mode = #tpu.pipeline_mode<synchronous>, transform_indices = @transform_1, window_bounds = array<i64: 32, 256>}, {pipeline_mode = #tpu.pipeline_mode<synchronous>, transform_indices = @transform_2, window_bounds = array<i64: 1, 256>}, {pipeline_mode = #tpu.pipeline_mode<synchronous>, transform_indices = @transform_3, window_bounds = array<i64: 256, 8>}, {pipeline_mode = #tpu.pipeline_mode<synchronous>, transform_indices = @transform_4, window_bounds = array<i64: 1, 8>}, {transform_indices = @transform_5, window_bounds = array<i64: 2, 8>}]} {
    %c0 = arith.constant 0 : index
    %c0_0 = arith.constant 0 : index
    %0 = vector.load %arg1[%c0, %c0_0] : memref<2x32xf32, #tpu.memory_space<vmem>>, vector<2x32xf32>
    %1 = arith.truncf %0 : vector<2x32xf32> to vector<2x32xbf16>
    %c0_1 = arith.constant 0 : index
    %c0_2 = arith.constant 0 : index
    %2 = vector.load %arg2[%c0_1, %c0_2] : memref<32x256xbf16, #tpu.memory_space<vmem>>, vector<32x256xbf16>
    %cst = arith.constant dense<0.000000e+00> : vector<2x256xf32>
    %3 = tpu.matmul %1, %2, %cst {dimension_numbers = #tpu.dot_dimension_numbers<[1], [0], [0], [1], [0, 0, 1, 1], [], []>} : vector<2x32xbf16>, vector<32x256xbf16>, vector<2x256xf32> -> vector<2x256xf32>
    %c0_3 = arith.constant 0 : index
    %c0_4 = arith.constant 0 : index
    %4 = vector.load %arg3[%c0_3, %c0_4] : memref<1x256xf32, #tpu.memory_space<vmem>>, vector<1x256xf32>
    %5 = vector.broadcast %4 : vector<1x256xf32> to vector<2x256xf32>
    %6 = arith.addf %3, %5 : vector<2x256xf32>
    %cst_5 = arith.constant 0.000000e+00 : f32
    %7 = vector.broadcast %cst_5 : f32 to vector<2x256xf32>
    %8 = arith.maximumf %6, %7 : vector<2x256xf32>
    %9 = arith.truncf %8 : vector<2x256xf32> to vector<2x256xbf16>
    %c0_6 = arith.constant 0 : index
    %c0_7 = arith.constant 0 : index
    %10 = vector.load %arg4[%c0_6, %c0_7] : memref<256x8xbf16, #tpu.memory_space<vmem>>, vector<256x8xbf16>
    %cst_8 = arith.constant dense<0.000000e+00> : vector<2x8xf32>
    %11 = tpu.matmul %9, %10, %cst_8 {dimension_numbers = #tpu.dot_dimension_numbers<[1], [0], [0], [1], [0, 0, 1, 1], [], []>} : vector<2x256xbf16>, vector<256x8xbf16>, vector<2x8xf32> -> vector<2x8xf32>
    %c0_9 = arith.constant 0 : index
    %c0_10 = arith.constant 0 : index
    %12 = vector.load %arg5[%c0_9, %c0_10] : memref<1x8xf32, #tpu.memory_space<vmem>>, vector<1x8xf32>
    %13 = vector.broadcast %12 : vector<1x8xf32> to vector<2x8xf32>
    %14 = arith.addf %11, %13 : vector<2x8xf32>
    %cst_11 = arith.constant dense<0xFF800000> : vector<2xf32>
    %15 = vector.multi_reduction <maximumf>, %14, %cst_11 [1] : vector<2x8xf32> to vector<2xf32>
    %16 = vector.shape_cast %15 : vector<2xf32> to vector<2x1xf32>
    %17 = vector.broadcast %16 : vector<2x1xf32> to vector<2x8xf32>
    %18 = arith.subf %14, %17 : vector<2x8xf32>
    %19 = math.exp %18 : vector<2x8xf32>
    %cst_12 = arith.constant dense<0.000000e+00> : vector<2xf32>
    %20 = vector.multi_reduction <add>, %19, %cst_12 [1] : vector<2x8xf32> to vector<2xf32>
    %21 = vector.shape_cast %20 : vector<2xf32> to vector<2x1xf32>
    %22 = vector.broadcast %21 : vector<2x1xf32> to vector<2x8xf32>
    %23 = arith.divf %19, %22 : vector<2x8xf32>
    %c0_13 = arith.constant 0 : index
    %c0_14 = arith.constant 0 : index
    %24 = vector.load %arg6[%c0_13, %c0_14] : memref<2x8xf32, #tpu.memory_space<vmem>>, vector<2x8xf32>
    tpu.vector_store %arg6[%c0_13, %c0_14], %23 {strides = array<i32>} : memref<2x8xf32, #tpu.memory_space<vmem>>, vector<2x8xf32>,
    return
  }
  func.func @transform_0(%arg0: i32) -> (i32, i32) {
    %c0_i32 = arith.constant 0 : i32
    %c0_i32_0 = arith.constant 0 : i32
    return %arg0, %c0_i32 : i32, i32
  }
  func.func @transform_1(%arg0: i32) -> (i32, i32) {
    %c0_i32 = arith.constant 0 : i32
    %c0_i32_0 = arith.constant 0 : i32
    %c0_i32_1 = arith.constant 0 : i32
    return %c0_i32, %c0_i32_0 : i32, i32
  }
  func.func @transform_2(%arg0: i32) -> (i32, i32) {
    %c0_i32 = arith.constant 0 : i32
    %c0_i32_0 = arith.constant 0 : i32
    %c0_i32_1 = arith.constant 0 : i32
    return %c0_i32, %c0_i32_0 : i32, i32
  }
  func.func @transform_3(%arg0: i32) -> (i32, i32) {
    %c0_i32 = arith.constant 0 : i32
    %c0_i32_0 = arith.constant 0 : i32
    %c0_i32_1 = arith.constant 0 : i32
    return %c0_i32, %c0_i32_0 : i32, i32
  }
  func.func @transform_4(%arg0: i32) -> (i32, i32) {
    %c0_i32 = arith.constant 0 : i32
    %c0_i32_0 = arith.constant 0 : i32
    %c0_i32_1 = arith.constant 0 : i32
    return %c0_i32, %c0_i32_0 : i32, i32
  }
  func.func @transform_5(%arg0: i32) -> (i32, i32) {
    %c0_i32 = arith.constant 0 : i32
    %c0_i32_0 = arith.constant 0 : i32
    return %arg0, %c0_i32 : i32, i32
  }
}

</mosaic_0001>

<llo_original>
// kernel: tpu_custom_call.1
$region0: #{tpu_custom_call.1}
  #allocation0 [shape = 'u32[]', space=smem, size = 0x4, offset = 0x4, fixed_abs, tag = 'smem constant byte address 0x4 - core index']
  #allocation1 [shape = 'u32[144,128]{1,0:T(1,128)}', space=vmem, size = 0x12000, scoped, tag = 'internal scratch']
  %s0 = inlined_call_operand.vmem [shape: f32[2,32], index: 0, kind: input, shape index: {}]
  %s1 = inlined_call_operand.vmem [shape: bf16[32,256], index: 1, kind: input, shape index: {}]
  %s2 = inlined_call_operand.vmem [shape: f32[1,256], index: 2, kind: input, shape index: {}]
  %s3 = inlined_call_operand.vmem [shape: bf16[256,8], index: 3, kind: input, shape index: {}]
  %s4 = inlined_call_operand.vmem [shape: f32[1,8], index: 4, kind: input, shape index: {}]
  %s5 = inlined_call_operand.hbm [shape: f32[2,8], index: 5, kind: output, shape index: {}]
  %s6 = sld [smem:[#allocation0]]
  $region30: #{tpu_custom_call.1} parent=0
    _
  %s8 = ssub.s32 1, %s6
  %s9 = scalar_select 0, %s8, %s6
  $region1: #{tpu_custom_call.1} parent=0
    #allocation2 [shape = 'u8[1024]{0}', space=vmem, size = 0x400, scoped, tag = 'output window, operand 0, single buffered']
    #allocation3 [shape = 's32[1]{0}', space=sflag, size = 0x4, scoped, tag = 'scoped memory for tpu_custom_call.1']
    %10 = vsyncpa [#allocation3], 0
    // Predicated region
    $region2: #{tpu_custom_call.1} parent=1 // pred_check
      _
    $region3: #{tpu_custom_call.1} parent=1 // pred_check_branch
      %12 = sbr.rel (0) target = $region5
    $region4: #{tpu_custom_call.1} parent=1 // pred_region
      _
    $region5: #{tpu_custom_call.1} parent=1 // pred_fallthru
      _
    // Predicated region
    $region6: #{tpu_custom_call.1} parent=1 // pred_check
      _
    $region7: #{tpu_custom_call.1} parent=1 // pred_check_branch
      %14 = sbr.rel (0) target = $region9
    $region8: #{tpu_custom_call.1} parent=1 // pred_region
      _
    $region9: #{tpu_custom_call.1} parent=1 // pred_fallthru
      _
    // Predicated region
    $region10: #{tpu_custom_call.1} parent=1 // pred_check
      _
    $region11: #{tpu_custom_call.1} parent=1 // pred_check_branch
      %16 = sbr.rel (0) target = $region13
    $region12: #{tpu_custom_call.1} parent=1 // pred_region
      _
    $region13: #{tpu_custom_call.1} parent=1 // pred_fallthru
      _
    // Predicated region
    $region14: #{tpu_custom_call.1} parent=1 // pred_check
      _
    $region15: #{tpu_custom_call.1} parent=1 // pred_check_branch
      %18 = sbr.rel (0) target = $region17
    $region16: #{tpu_custom_call.1} parent=1 // pred_region
      _
    $region17: #{tpu_custom_call.1} parent=1 // pred_fallthru
      _
    // Predicated region
    $region18: #{tpu_custom_call.1} parent=1 // pred_check
      _
    $region19: #{tpu_custom_call.1} parent=1 // pred_check_branch
      %20 = sbr.rel (0) target = $region21
    $region20: #{tpu_custom_call.1} parent=1 // pred_region
      _
    $region21: #{tpu_custom_call.1} parent=1 // pred_fallthru
      _
    %v22 = vld [vmem:[%s0] sm:$0x3]
    %v23 = vpack.c.bf16 %v22, %v22
    %v24 = vld [vmem:[%s1] sm:$0xff]
    %v25 = vld [vmem:[%s1 + $0x8] sm:$0xff]
    %v26 = vld [vmem:[%s1 + $0x10] sm:$0xff]
    %v27 = vld [vmem:[%s1 + $0x18] sm:$0xff]
    %v28 = vld [vmem:[%s2] sm:$0x3]
    %v30 = vlaneseq
    %v31 = vshrl.u32 %v30, 7
    %v32 = vsub.s32 0, %v31
    %v33 = vrot.slane %v28, %v32
    %v34 = vlaneseq
    %v35 = vshrl.u32 %v34, 7
    %v36 = vsub.s32 1, %v35
    %v37 = vrot.slane %v28, %v36
    %v44 = vunpack.c.l.b16 %v24
    %v45 = vunpack.c.h.b16 %v24
    %v46 = vunpack.c.l.b16 %v25
    %v47 = vunpack.c.h.b16 %v25
    %v48 = vunpack.c.l.b16 %v26
    %v49 = vunpack.c.h.b16 %v26
    %v50 = vunpack.c.l.b16 %v27
    %v51 = vunpack.c.h.b16 %v27
    %v52 = vpack.c.b16 %v46, %v44
    %v53 = vpack.c.b16 %v47, %v45
    %v54 = vpack.c.b16 %v50, %v48
    %v55 = vpack.c.b16 %v51, %v49
    %vm60 = vcmask 261120
    %v62 = vsel %vm60, %v23, 0
    %64 = vmatprep.subr.bf16.mxu0 %v53
    %65 = vmatpush1.bf16.msra.mxu0 %v52
    %66 = vmatprep.subr.bf16.mxu0 %v55
    %67 = vmatpush1.bf16.msra.mxu0 %v54
    %68 = vmatprep.subr.bf16.mxu0 0
    %69 = vmatpush1.bf16.msra.mxu0 0
    %70 = vmatprep.subr.bf16.mxu0 0
    %71 = vmatpush1.bf16.msra.mxu0 0
    %72 = vmatprep.subr.bf16.mxu0 0
    %73 = vmatpush1.bf16.msra.mxu0 0
    %74 = vmatprep.subr.bf16.mxu0 0
    %75 = vmatpush1.bf16.msra.mxu0 0
    %76 = vmatprep.subr.bf16.mxu0 0
    %77 = vmatpush1.bf16.msra.mxu0 0
    %78 = vmatprep.subr.bf16.mxu0 0
    %79 = vmatpush1.bf16.msra.mxu0 0
    %80 = vmatprep.subr.bf16.mxu0 0
    %81 = vmatpush1.bf16.msra.mxu0 0
    %82 = vmatprep.subr.bf16.mxu0 0
    %83 = vmatpush1.bf16.msra.mxu0 0
    %84 = vmatprep.subr.bf16.mxu0 0
    %85 = vmatpush1.bf16.msra.mxu0 0
    %86 = vmatprep.subr.bf16.mxu0 0
    %87 = vmatpush1.bf16.msra.mxu0 0
    %88 = vmatprep.subr.bf16.mxu0 0
    %89 = vmatpush1.bf16.msra.mxu0 0
    %90 = vmatprep.subr.bf16.mxu0 0
    %91 = vmatpush1.bf16.msra.mxu0 0
    %92 = vmatprep.subr.bf16.mxu0 0
    %93 = vmatpush1.bf16.msra.mxu0 0
    %94 = vmatprep.subr.bf16.mxu0 0
    %95 = vmatpush1.bf16.msra.mxu0 0
    %96 = vmatprep.mubr.bf16.mxu0 0
    %97 = vmatmul.mubr.bf16.gmra.mrb[0].mxu0 %v62
    %v98 = vpop.f32.mrb[0].mxu0
    %v99 = vadd.f32 %v33, %v98
    %v100 = vpop.f32.mrb[0].mxu0
    %v101 = vadd.f32 %v37, %v100
    %v102 = vpop.f32.mrb[0].mxu0
    %v103 = vpop.f32.mrb[0].mxu0
    %104 = vdwg.mxu0
    %v105 = vmax.f32 %v99, 0.0
    %v106 = vmax.f32 %v101, 0.0
    %v107 = vpack.c.bf16 %v105, %v105
    %v108 = vpack.c.bf16 %v106, %v106
    %v109 = vld [vmem:[%s3] sm:$0xf]
    %v110 = vld [vmem:[%s3 + $0x4] sm:$0xf]
    %v111 = vld [vmem:[%s3 + $0x8] sm:$0xf]
    %v112 = vld [vmem:[%s3 + $0xc] sm:$0xf]
    %v113 = vld [vmem:[%s3 + $0x10] sm:$0xf]
    %v114 = vld [vmem:[%s3 + $0x14] sm:$0xf]
    %v115 = vld [vmem:[%s3 + $0x18] sm:$0xf]
    %v116 = vld [vmem:[%s3 + $0x1c] sm:$0xf]
    %v117 = vld [vmem:[%s3 + $0x20] sm:$0xf]
    %v118 = vld [vmem:[%s3 + $0x24] sm:$0xf]
    %v119 = vld [vmem:[%s3 + $0x28] sm:$0xf]
    %v120 = vld [vmem:[%s3 + $0x2c] sm:$0xf]
    %v121 = vld [vmem:[%s3 + $0x30] sm:$0xf]
    %v122 = vld [vmem:[%s3 + $0x34] sm:$0xf]
    %v123 = vld [vmem:[%s3 + $0x38] sm:$0xf]
    %v124 = vld [vmem:[%s3 + $0x3c] sm:$0xf]
    %v125 = vld [vmem:[%s3 + $0x40] sm:$0xf]
    %v126 = vld [vmem:[%s3 + $0x44] sm:$0xf]
    %v127 = vld [vmem:[%s3 + $0x48] sm:$0xf]
    %v128 = vld [vmem:[%s3 + $0x4c] sm:$0xf]
    %v129 = vld [vmem:[%s3 + $0x50] sm:$0xf]
    %v130 = vld [vmem:[%s3 + $0x54] sm:$0xf]
    %v131 = vld [vmem:[%s3 + $0x58] sm:$0xf]
    %v132 = vld [vmem:[%s3 + $0x5c] sm:$0xf]
    %v133 = vld [vmem:[%s3 + $0x60] sm:$0xf]
    %v134 = vld [vmem:[%s3 + $0x64] sm:$0xf]
    %v135 = vld [vmem:[%s3 + $0x68] sm:$0xf]
    %v136 = vld [vmem:[%s3 + $0x6c] sm:$0xf]
    %v137 = vld [vmem:[%s3 + $0x70] sm:$0xf]
    %v138 = vld [vmem:[%s3 + $0x74] sm:$0xf]
    %v139 = vld [vmem:[%s3 + $0x78] sm:$0xf]
    %v140 = vld [vmem:[%s3 + $0x7c] sm:$0xf]
    %v141 = vld [vmem:[%s4] sm:$0x1]
    %v143 = vlaneseq
    %v144 = vshrl.u32 %v143, 7
    %v145 = vsub.s32 0, %v144
    %v146 = vrot.slane %v141, %v145
    %v180 = vunpack.c.l.b16 %v109
    %v181 = vunpack.c.l.b16 %v110
    %v182 = vunpack.c.l.b16 %v111
    %v183 = vunpack.c.l.b16 %v112
    %v184 = vunpack.c.l.b16 %v113
    %v185 = vunpack.c.l.b16 %v114
    %v186 = vunpack.c.l.b16 %v115
    %v187 = vunpack.c.l.b16 %v116
    %v188 = vunpack.c.l.b16 %v117
    %v189 = vunpack.c.l.b16 %v118
    %v190 = vunpack.c.l.b16 %v119
    %v191 = vunpack.c.l.b16 %v120
    %v192 = vunpack.c.l.b16 %v121
    %v193 = vunpack.c.l.b16 %v122
    %v194 = vunpack.c.l.b16 %v123
    %v195 = vunpack.c.l.b16 %v124
    %v196 = vunpack.c.l.b16 %v125
    %v197 = vunpack.c.l.b16 %v126
    %v198 = vunpack.c.l.b16 %v127
    %v199 = vunpack.c.l.b16 %v128
    %v200 = vunpack.c.l.b16 %v129
    %v201 = vunpack.c.l.b16 %v130
    %v202 = vunpack.c.l.b16 %v131
    %v203 = vunpack.c.l.b16 %v132
    %v204 = vunpack.c.l.b16 %v133
    %v205 = vunpack.c.l.b16 %v134
    %v206 = vunpack.c.l.b16 %v135
    %v207 = vunpack.c.l.b16 %v136
    %v208 = vunpack.c.l.b16 %v137
    %v209 = vunpack.c.l.b16 %v138
    %v210 = vunpack.c.l.b16 %v139
    %v211 = vunpack.c.l.b16 %v140
    %v212 = vpack.c.b16 %v181, %v180
    %v213 = vpack.c.b16 %v183, %v182
    %v214 = vpack.c.b16 %v185, %v184
    %v215 = vpack.c.b16 %v187, %v186
    %v216 = vpack.c.b16 %v189, %v188
    %v217 = vpack.c.b16 %v191, %v190
    %v218 = vpack.c.b16 %v193, %v192
    %v219 = vpack.c.b16 %v195, %v194
    %v220 = vpack.c.b16 %v197, %v196
    %v221 = vpack.c.b16 %v199, %v198
    %v222 = vpack.c.b16 %v201, %v200
    %v223 = vpack.c.b16 %v203, %v202
    %v224 = vpack.c.b16 %v205, %v204
    %v225 = vpack.c.b16 %v207, %v206
    %v226 = vpack.c.b16 %v209, %v208
    %v227 = vpack.c.b16 %v211, %v210
    %244 = vmatprep.subr.bf16.mxu0 0
    %245 = vmatpush1.bf16.msra.mxu0 %v212
    %246 = vmatprep.subr.bf16.mxu0 0
    %247 = vmatpush1.bf16.msra.mxu0 %v213
    %248 = vmatprep.subr.bf16.mxu0 0
    %249 = vmatpush1.bf16.msra.mxu0 %v214
    %250 = vmatprep.subr.bf16.mxu0 0
    %251 = vmatpush1.bf16.msra.mxu0 %v215
    %252 = vmatprep.subr.bf16.mxu0 0
    %253 = vmatpush1.bf16.msra.mxu0 %v216
    %254 = vmatprep.subr.bf16.mxu0 0
    %255 = vmatpush1.bf16.msra.mxu0 %v217
    %256 = vmatprep.subr.bf16.mxu0 0
    %257 = vmatpush1.bf16.msra.mxu0 %v218
    %258 = vmatprep.subr.bf16.mxu0 0
    %259 = vmatpush1.bf16.msra.mxu0 %v219
    %260 = vmatprep.subr.bf16.mxu0 0
    %261 = vmatpush1.bf16.msra.mxu0 %v220
    %262 = vmatprep.subr.bf16.mxu0 0
    %263 = vmatpush1.bf16.msra.mxu0 %v221
    %264 = vmatprep.subr.bf16.mxu0 0
    %265 = vmatpush1.bf16.msra.mxu0 %v222
    %266 = vmatprep.subr.bf16.mxu0 0
    %267 = vmatpush1.bf16.msra.mxu0 %v223
    %268 = vmatprep.subr.bf16.mxu0 0
    %269 = vmatpush1.bf16.msra.mxu0 %v224
    %270 = vmatprep.subr.bf16.mxu0 0
    %271 = vmatpush1.bf16.msra.mxu0 %v225
    %272 = vmatprep.subr.bf16.mxu0 0
    %273 = vmatpush1.bf16.msra.mxu0 %v226
    %274 = vmatprep.subr.bf16.mxu0 0
    %275 = vmatpush1.bf16.msra.mxu0 %v227
    %276 = vmatprep.mubr.bf16.mxu0 %v108
    %277 = vmatmul.mubr.bf16.gmra.mrb[0].mxu0 %v107
    %v278 = vpop.f32.mrb[0].mxu0
    %v279 = vadd.f32 %v146, %v278
    %v280 = vpop.f32.mrb[0].mxu0
    %v281 = vpop.f32.mrb[0].mxu0
    %v282 = vpop.f32.mrb[0].mxu0
    %283 = vdwg.mxu0
    %vm284 = vcmask 58368
    %v285 = vsel %vm284, %v279, -inf
    %286 = vmax.xlane.f32.xlu0 %v285
    %v287 = vpop.xlane.xlu0 %286
    %v288 = vsub.f32 %v279, %v287
    %v289 = vmul.f32 %v288, 1.442695
    %v290 = vpow.pop %v289
    %v291 = vsel %vm284, %v290, 0.0
    %292 = vadd.xlane.f32.xlu0 %v291
    %v293 = vpop.xlane.xlu0 %292
    %v294 = vrcp.pop %v293
    %v295 = vmul.f32 %v290, %v294
    %296 = vst.msk [vmem:[#allocation2] sm:$0x3] %vm284, %v295
    // Predicated region
    $region22: #{tpu_custom_call.1} parent=1 // pred_check
      _
    $region23: #{tpu_custom_call.1} parent=1 // pred_check_branch
      %298 = sbr.rel (0) target = $region25
    $region24: #{tpu_custom_call.1} parent=1 // pred_region
      %s300 = ssub.s32 32, 32
      %301 = vsyncadd [#allocation3], %s300
      %s303 = sshll.u32 [#allocation2], 4
      %s304 = int_to_ptr.vmem [resolvable:$true] %s303
      %306 = dma.vmem_to_hbm [thread:$0]  %s304, 32, %s5, [#allocation3]
    $region25: #{tpu_custom_call.1} parent=1 // pred_fallthru
      _
    // Predicated region
    $region26: #{tpu_custom_call.1} parent=1 // pred_check
      _
    $region27: #{tpu_custom_call.1} parent=1 // pred_check_branch
      %308 = sbr.rel (0) target = $region29
    $region28: #{tpu_custom_call.1} parent=1 // pred_region
      %309 = dma.done [#allocation3], 32
    $region29: #{tpu_custom_call.1} parent=1 // pred_fallthru
      _
    %310 = vsyncpa [#allocation3], 1

</llo_original>
